<compile_context>
chip_gen: v6e
topology: v6e:2x2x1
jax: 0.10.0
libtpu: 0.0.40
codegen_flags: <defaults>
</compile_context>

<pallas_src>
import functools

import jax
import jax.numpy as jnp
from jax import lax
from jax.experimental import pallas as pl
from jax.experimental.pallas import tpu as pltpu


def _round_up(x, m):
    return ((x + m - 1) // m) * m


def _project_kernel(h_ref, w_ref, z_ref, s_ref, *, d_pad):
    """z_aug = h @ [W_pad | w_src | w_dst]; split into z (bf16) and score columns (f32)."""
    z_aug = jnp.dot(h_ref[...], w_ref[...], preferred_element_type=jnp.float32)
    z_ref[...] = z_aug[:, :d_pad].astype(z_ref.dtype)    # lane-aligned slice
    s_ref[...] = z_aug[:, d_pad:]                         # col 0 = s_src, col 1 = s_dst


def _attn_kernel(ew_ref, z_ref, ssrc_ref, sdst_ref, out_ref, *, n_valid, n_total):
    """One destination-row tile: edge logits -> softmax over sources -> alpha @ z."""
    # [TM, 1] + [1, N] -> [TM, N] edge logits (dst rows, src columns), f32.
    logits = sdst_ref[...] + ssrc_ref[...]
    act = jnp.where(logits > 0, logits, 0.01 * logits)           # leaky_relu(0.01)
    e = ew_ref[...].astype(jnp.float32) * act                     # tfidf edge weight
    if n_valid < n_total:                                         # mask padded sources
        col = lax.broadcasted_iota(jnp.int32, e.shape, dimension=1)
        e = jnp.where(col < n_valid, e, -1e30)
    m = jnp.max(e, axis=-1, keepdims=True)
    p = jnp.exp(e - m)
    inv = pl.reciprocal(jnp.sum(p, axis=-1, keepdims=True), approx=True)   # EUP vrcp
    alpha = p * inv
    out_ref[...] = jnp.dot(alpha.astype(z_ref.dtype), z_ref[...],
                           preferred_element_type=jnp.float32).astype(out_ref.dtype)


def gat_layer(h, w_fc, attn_w, edge_weight, *, tile_m=128):
    """h: [N, in_dim]; w_fc: [out_dim, in_dim] (torch Linear layout);
    attn_w: [1, 2*out_dim] (torch Linear layout); edge_weight: [N_dst, N_src]."""
    n, in_dim = h.shape
    out_dim = w_fc.shape[0]
    assert edge_weight.shape == (n, n)
    assert tile_m % 8 == 0

    # ---- static padding / tiling decisions (lane-dense layouts) ----
    d_pad = _round_up(max(out_dim, 128), 128)      # lane-dense z / output columns
    n_pad = _round_up(n, 128)                      # lane-dense source axis
    tile_m = min(tile_m, n_pad)
    if n_pad % tile_m:
        n_pad = _round_up(n_pad, tile_m)
    grid_m = n_pad // tile_m

    # ---- parameter glue (plain JAX): fuse attention-score vectors into the projection ----
    wfc_t = w_fc.T.astype(jnp.float32)             # [in_dim, out_dim]
    a = attn_w.reshape(-1).astype(jnp.float32)
    w_src = wfc_t @ a[:out_dim]                    # s_src = z . a_src = h @ (W^T a_src)
    w_dst = wfc_t @ a[out_dim:]
    w_aug = jnp.zeros((in_dim, d_pad + 128), jnp.float32)
    w_aug = w_aug.at[:, :out_dim].set(wfc_t)
    w_aug = w_aug.at[:, d_pad].set(w_src)
    w_aug = w_aug.at[:, d_pad + 1].set(w_dst)

    h_pad = jnp.zeros((n_pad, in_dim), jnp.float32).at[:n].set(h.astype(jnp.float32))
    ew_pad = jnp.zeros((n_pad, n_pad), jnp.bfloat16).at[:n, :n].set(
        edge_weight.astype(jnp.bfloat16))

    vmem = pl.BlockSpec(memory_space=pltpu.MemorySpace.VMEM)

    # ---- kernel 1: fused projection (z + per-node score scalars), run once ----
    z_bf, s_all = pl.pallas_call(
        functools.partial(_project_kernel, d_pad=d_pad),
        out_shape=(jax.ShapeDtypeStruct((n_pad, d_pad), jnp.bfloat16),
                   jax.ShapeDtypeStruct((n_pad, 128), jnp.float32)),
        in_specs=[vmem, vmem],
        out_specs=(vmem, vmem),
        cost_estimate=pl.CostEstimate(
            flops=2 * n_pad * in_dim * (d_pad + 128),
            transcendentals=0,
            bytes_accessed=4 * (n_pad * in_dim + in_dim * (d_pad + 128))
            + 2 * n_pad * d_pad + 4 * n_pad * 128),
    )(h_pad, w_aug)

    # Tiny one-time relayouts (hoisted out of the per-tile loop): source scores as a
    # [1, N] row, destination scores as an [N, 1] column.
    s_src_row = s_all[:, 0].reshape(1, n_pad)
    s_dst_col = s_all[:, 1].reshape(n_pad, 1)

    # ---- kernel 2: dst-row-tiled attention + aggregation ----
    vmem_est = (2 * tile_m * n_pad * 2           # double-buffered bf16 edge tile
                + 2 * n_pad * d_pad * 2          # resident bf16 z
                + 2 * (n_pad + tile_m) * 4       # score vectors
                + 2 * tile_m * d_pad * 4         # double-buffered f32 output tile
                + 8 * tile_m * n_pad * 4)        # live f32 intermediates (logits/e/p/alpha)
    vmem_limit = int(min(max(2 * vmem_est, 16 << 20), 64 << 20))

    out_pad = pl.pallas_call(
        functools.partial(_attn_kernel, n_valid=n, n_total=n_pad),
        out_shape=jax.ShapeDtypeStruct((n_pad, d_pad), jnp.float32),
        grid=(grid_m,),
        in_specs=[
            pl.BlockSpec((tile_m, n_pad), lambda i: (i, 0)),    # streamed edge-weight tile
            pl.BlockSpec((n_pad, d_pad), lambda i: (0, 0)),     # resident z (bf16)
            pl.BlockSpec((1, n_pad), lambda i: (0, 0)),         # resident s_src row
            pl.BlockSpec((tile_m, 1), lambda i: (i, 0)),        # s_dst for this dst tile
        ],
        out_specs=pl.BlockSpec((tile_m, d_pad), lambda i: (i, 0)),
        compiler_params=pltpu.CompilerParams(
            dimension_semantics=("parallel",),
            vmem_limit_bytes=vmem_limit),
        cost_estimate=pl.CostEstimate(
            flops=2 * n_pad * n_pad * d_pad + 8 * n_pad * n_pad,
            transcendentals=n_pad * n_pad + n_pad,
            bytes_accessed=2 * n_pad * n_pad + 2 * n_pad * d_pad
            + 8 * n_pad + 4 * n_pad * d_pad),
    )(ew_pad, z_bf, s_src_row, s_dst_col)

    return out_pad[:n, :out_dim].astype(h.dtype)


def gat_reference(h, w_fc, attn_w, edge_weight):
    z = h @ w_fc.T
    a = attn_w.reshape(-1)
    d = w_fc.shape[0]
    s_src = z @ a[:d]
    s_dst = z @ a[d:]
    logits = s_dst[:, None] + s_src[None, :]
    act = jnp.where(logits > 0, logits, 0.01 * logits)
    e = edge_weight * act
    alpha = jax.nn.softmax(e, axis=-1)
    return alpha @ z


if __name__ == "__main__":
    N, IN_DIM, OUT_DIM = 200, 64, 16   # exercises padding (200 -> 256) and a 2-tile grid

    key = jax.random.PRNGKey(0)
    k_h, k_fc, k_attn, k_w = jax.random.split(key, 4)

    h = jax.random.normal(k_h, (N, IN_DIM), dtype=jnp.float32)
    # Deterministic parameter init (shapes follow nn.Linear in __init__)
    w_fc = jax.random.normal(k_fc, (OUT_DIM, IN_DIM), dtype=jnp.float32) * 0.1
    attn_w = jax.random.normal(k_attn, (1, 2 * OUT_DIM), dtype=jnp.float32) * 0.1
    # Fully-connected graph with positive tfidf edge weights: [dst, src]
    edge_weight = jax.random.uniform(k_w, (N, N), dtype=jnp.float32, minval=0.1, maxval=1.0)

    out = gat_layer(h, w_fc, attn_w, edge_weight)
    out = jax.block_until_ready(out)

    ref = gat_reference(h, w_fc, attn_w, edge_weight)
    assert out.shape == (N, OUT_DIM)
    # bf16 edge-weight / z streaming + approx reciprocal => looser tolerance than pure f32.
    assert jnp.allclose(out, ref, atol=1e-2, rtol=1e-2), "mismatch vs reference"

    print("KERNEL_OK")
</pallas_src>

<mosaic_0001>
module attributes {stable_mosaic.version = 11 : i64} {
  func.func @_project_kernel(%arg0: memref<256x64xf32, #tpu.memory_space<vmem>>, %arg1: memref<64x256xf32, #tpu.memory_space<vmem>>, %arg2: memref<256x128xbf16, #tpu.memory_space<vmem>>, %arg3: memref<256x128xf32, #tpu.memory_space<vmem>>) attributes {dimension_semantics = [], scalar_prefetch = 0 : i64, scratch_operands = 0 : i64, tpu.core_type = #tpu.core_type<tc>} {
    %c0 = arith.constant 0 : index
    %c0_0 = arith.constant 0 : index
    %0 = vector.load %arg0[%c0, %c0_0] : memref<256x64xf32, #tpu.memory_space<vmem>>, vector<256x64xf32>
    %c0_1 = arith.constant 0 : index
    %c0_2 = arith.constant 0 : index
    %1 = vector.load %arg1[%c0_1, %c0_2] : memref<64x256xf32, #tpu.memory_space<vmem>>, vector<64x256xf32>
    %cst = arith.constant dense<0.000000e+00> : vector<256x256xf32>
    %2 = tpu.matmul %0, %1, %cst {dimension_numbers = #tpu.dot_dimension_numbers<[1], [0], [0], [1], [0, 0, 1, 1], [], []>} : vector<256x64xf32>, vector<64x256xf32>, vector<256x256xf32> -> vector<256x256xf32>
    %3 = vector.extract_strided_slice %2 {offsets = [0, 0], sizes = [256, 128], strides = [1, 1]} : vector<256x256xf32> to vector<256x128xf32>
    %4 = arith.truncf %3 : vector<256x128xf32> to vector<256x128xbf16>
    %c0_3 = arith.constant 0 : index
    %c0_4 = arith.constant 0 : index
    %5 = vector.load %arg2[%c0_3, %c0_4] : memref<256x128xbf16, #tpu.memory_space<vmem>>, vector<256x128xbf16>
    tpu.vector_store %arg2[%c0_3, %c0_4], %4 {strides = array<i32>} : memref<256x128xbf16, #tpu.memory_space<vmem>>, vector<256x128xbf16>,
    %6 = vector.extract_strided_slice %2 {offsets = [0, 128], sizes = [256, 128], strides = [1, 1]} : vector<256x256xf32> to vector<256x128xf32>
    %c0_5 = arith.constant 0 : index
    %c0_6 = arith.constant 0 : index
    %7 = vector.load %arg3[%c0_5, %c0_6] : memref<256x128xf32, #tpu.memory_space<vmem>>, vector<256x128xf32>
    tpu.vector_store %arg3[%c0_5, %c0_6], %6 {strides = array<i32>} : memref<256x128xf32, #tpu.memory_space<vmem>>, vector<256x128xf32>,
    return
  }
}

</mosaic_0001>

<llo_original>
// kernel: tpu_custom_call.1
$region0: #{tpu_custom_call.1}
  #allocation0 [shape = 'u32[]', space=smem, size = 0x4, offset = 0x4, fixed_abs, tag = 'smem constant byte address 0x4 - core index']
  #allocation1 [shape = 'u32[144,128]{1,0:T(1,128)}', space=vmem, size = 0x12000, scoped, tag = 'internal scratch']
  %s0 = inlined_call_operand.vmem [shape: f32[256,64], index: 0, kind: input, shape index: {}]
  %s1 = inlined_call_operand.vmem [shape: f32[64,256], index: 1, kind: input, shape index: {}]
  %s2 = inlined_call_operand.hbm [shape: bf16[256,128], index: 2, kind: output, shape index: {0}]
  %s3 = inlined_call_operand.hbm [shape: f32[256,128], index: 3, kind: output, shape index: {1}]
  %4 = xla_tuple %s2, %s3
  %s5 = sld [smem:[#allocation0]]
  $region26: #{tpu_custom_call.1} parent=0
    _
  %s7 = ssub.s32 1, %s5
  %s8 = scalar_select 0, %s7, %s5
  $region1: #{tpu_custom_call.1} parent=0
    #allocation2 [shape = 'u8[65536]{0}', space=vmem, size = 0x10000, scoped, tag = 'output window, operand 0, single buffered']
    #allocation3 [shape = 's32[1]{0}', space=sflag, size = 0x4, scoped, tag = 'scoped memory for tpu_custom_call.1']
    #allocation4 [shape = 'u8[131072]{0}', space=vmem, size = 0x20000, scoped, tag = 'output window, operand 1, single buffered']
    #allocation5 [shape = 's32[1]{0}', space=sflag, size = 0x4, scoped, tag = 'scoped memory for tpu_custom_call.1']
    %9 = vsyncpa [#allocation3], 0
    %10 = vsyncpa [#allocation5], 0
    // Predicated region
    $region2: #{tpu_custom_call.1} parent=1 // pred_check
      _
    $region3: #{tpu_custom_call.1} parent=1 // pred_check_branch
      %12 = sbr.rel (0) target = $region5
    $region4: #{tpu_custom_call.1} parent=1 // pred_region
      _
    $region5: #{tpu_custom_call.1} parent=1 // pred_fallthru
      _
    // Predicated region
    $region6: #{tpu_custom_call.1} parent=1 // pred_check
      _
    $region7: #{tpu_custom_call.1} parent=1 // pred_check_branch
      %14 = sbr.rel (0) target = $region9
    $region8: #{tpu_custom_call.1} parent=1 // pred_region
      _
    $region9: #{tpu_custom_call.1} parent=1 // pred_fallthru
      _
    %v15 = vld [vmem:[%s0] sm:$0xff]
    %v16 = vld [vmem:[%s0 + $0x8] sm:$0xff]
    %v17 = vld [vmem:[%s0 + $0x10] sm:$0xff]
    %v18 = vld [vmem:[%s0 + $0x18] sm:$0xff]
    %v19 = vld [vmem:[%s0 + $0x20] sm:$0xff]
    %v20 = vld [vmem:[%s0 + $0x28] sm:$0xff]
    %v21 = vld [vmem:[%s0 + $0x30] sm:$0xff]
    %v22 = vld [vmem:[%s0 + $0x38] sm:$0xff]
    %v23 = vld [vmem:[%s0 + $0x40] sm:$0xff]
    %v24 = vld [vmem:[%s0 + $0x48] sm:$0xff]
    %v25 = vld [vmem:[%s0 + $0x50] sm:$0xff]
    %v26 = vld [vmem:[%s0 + $0x58] sm:$0xff]
    %v27 = vld [vmem:[%s0 + $0x60] sm:$0xff]
    %v28 = vld [vmem:[%s0 + $0x68] sm:$0xff]
    %v29 = vld [vmem:[%s0 + $0x70] sm:$0xff]
    %v30 = vld [vmem:[%s0 + $0x78] sm:$0xff]
    %v31 = vld [vmem:[%s0 + $0x80] sm:$0xff]
    %v32 = vld [vmem:[%s0 + $0x88] sm:$0xff]
    %v33 = vld [vmem:[%s0 + $0x90] sm:$0xff]
    %v34 = vld [vmem:[%s0 + $0x98] sm:$0xff]
    %v35 = vld [vmem:[%s0 + $0xa0] sm:$0xff]
    %v36 = vld [vmem:[%s0 + $0xa8] sm:$0xff]
    %v37 = vld [vmem:[%s0 + $0xb0] sm:$0xff]
    %v38 = vld [vmem:[%s0 + $0xb8] sm:$0xff]
    %v39 = vld [vmem:[%s0 + $0xc0] sm:$0xff]
    %v40 = vld [vmem:[%s0 + $0xc8] sm:$0xff]
    %v41 = vld [vmem:[%s0 + $0xd0] sm:$0xff]
    %v42 = vld [vmem:[%s0 + $0xd8] sm:$0xff]
    %v43 = vld [vmem:[%s0 + $0xe0] sm:$0xff]
    %v44 = vld [vmem:[%s0 + $0xe8] sm:$0xff]
    %v45 = vld [vmem:[%s0 + $0xf0] sm:$0xff]
    %v46 = vld [vmem:[%s0 + $0xf8] sm:$0xff]
    %v47 = vld [vmem:[%s1] sm:$0xff]
    %v48 = vld [vmem:[%s1 + $0x8] sm:$0xff]
    %v49 = vld [vmem:[%s1 + $0x10] sm:$0xff]
    %v50 = vld [vmem:[%s1 + $0x18] sm:$0xff]
    %v51 = vld [vmem:[%s1 + $0x20] sm:$0xff]
    %v52 = vld [vmem:[%s1 + $0x28] sm:$0xff]
    %v53 = vld [vmem:[%s1 + $0x30] sm:$0xff]
    %v54 = vld [vmem:[%s1 + $0x38] sm:$0xff]
    %v55 = vld [vmem:[%s1 + $0x40] sm:$0xff]
    %v56 = vld [vmem:[%s1 + $0x48] sm:$0xff]
    %v57 = vld [vmem:[%s1 + $0x50] sm:$0xff]
    %v58 = vld [vmem:[%s1 + $0x58] sm:$0xff]
    %v59 = vld [vmem:[%s1 + $0x60] sm:$0xff]
    %v60 = vld [vmem:[%s1 + $0x68] sm:$0xff]
    %v61 = vld [vmem:[%s1 + $0x70] sm:$0xff]
    %v62 = vld [vmem:[%s1 + $0x78] sm:$0xff]
    %vm63 = vcmask 523264
    %v65 = vsel %vm63, %v15, 0
    %v68 = vsel %vm63, %v16, 0
    %v71 = vsel %vm63, %v17, 0
    %v74 = vsel %vm63, %v18, 0
    %v77 = vsel %vm63, %v19, 0
    %v80 = vsel %vm63, %v20, 0
    %v83 = vsel %vm63, %v21, 0
    %v86 = vsel %vm63, %v22, 0
    %v89 = vsel %vm63, %v23, 0
    %v92 = vsel %vm63, %v24, 0
    %v95 = vsel %vm63, %v25, 0
    %v98 = vsel %vm63, %v26, 0
    %v101 = vsel %vm63, %v27, 0
    %v104 = vsel %vm63, %v28, 0
    %v107 = vsel %vm63, %v29, 0
    %v110 = vsel %vm63, %v30, 0
    %v113 = vsel %vm63, %v31, 0
    %v116 = vsel %vm63, %v32, 0
    %v119 = vsel %vm63, %v33, 0
    %v122 = vsel %vm63, %v34, 0
    %v125 = vsel %vm63, %v35, 0
    %v128 = vsel %vm63, %v36, 0
    %v131 = vsel %vm63, %v37, 0
    %v134 = vsel %vm63, %v38, 0
    %v137 = vsel %vm63, %v39, 0
    %v140 = vsel %vm63, %v40, 0
    %v143 = vsel %vm63, %v41, 0
    %v146 = vsel %vm63, %v42, 0
    %v149 = vsel %vm63, %v43, 0
    %v152 = vsel %vm63, %v44, 0
    %v155 = vsel %vm63, %v45, 0
    %v158 = vsel %vm63, %v46, 0
    %160 = vmatprep.subr.mxu0 0.0
    %161 = vmatpush1.msra.mxu0 0.0
    %162 = vmatprep.subr.mxu0 0.0
    %163 = vmatpush1.msra.mxu0 0.0
    %164 = vmatprep.subr.mxu0 0.0
    %165 = vmatpush1.msra.mxu0 0.0
    %166 = vmatprep.subr.mxu0 0.0
    %167 = vmatpush1.msra.mxu0 0.0
    %168 = vmatprep.subr.mxu0 0.0
    %169 = vmatpush1.msra.mxu0 0.0
    %170 = vmatprep.subr.mxu0 0.0
    %171 = vmatpush1.msra.mxu0 0.0
    %172 = vmatprep.subr.mxu0 0.0
    %173 = vmatpush1.msra.mxu0 0.0
    %174 = vmatprep.subr.mxu0 0.0
    %175 = vmatpush1.msra.mxu0 0.0
    %176 = vmatprep.subr.mxu0 %v62
    %177 = vmatpush1.msra.mxu0 %v61
    %178 = vmatprep.subr.mxu0 %v60
    %179 = vmatpush1.msra.mxu0 %v59
    %180 = vmatprep.subr.mxu0 %v58
    %181 = vmatpush1.msra.mxu0 %v57
    %182 = vmatprep.subr.mxu0 %v56
    %183 = vmatpush1.msra.mxu0 %v55
    %184 = vmatprep.subr.mxu0 %v54
    %185 = vmatpush1.msra.mxu0 %v53
    %186 = vmatprep.subr.mxu0 %v52
    %187 = vmatpush1.msra.mxu0 %v51
    %188 = vmatprep.subr.mxu0 %v50
    %189 = vmatpush1.msra.mxu0 %v49
    %190 = vmatprep.subr.mxu0 %v48
    %191 = vmatpush1.msra.mxu0 %v47
    %192 = vmatprep.subr.mxu0 0.0
    %193 = vmatpush2.msra.mxu0 0.0
    %194 = vmatprep.subr.mxu0 0.0
    %195 = vmatpush2.msra.mxu0 0.0
    %196 = vmatprep.subr.mxu0 0.0
    %197 = vmatpush2.msra.mxu0 0.0
    %198 = vmatprep.subr.mxu0 0.0
    %199 = vmatpush2.msra.mxu0 0.0
    %200 = vmatprep.subr.mxu0 0.0
    %201 = vmatpush2.msra.mxu0 0.0
    %202 = vmatprep.subr.mxu0 0.0
    %203 = vmatpush2.msra.mxu0 0.0
    %204 = vmatprep.subr.mxu0 0.0
    %205 = vmatpush2.msra.mxu0 0.0
    %206 = vmatprep.subr.mxu0 0.0
    %207 = vmatpush2.msra.mxu0 0.0
    %208 = vmatprep.subr.mxu0 0.0
    %209 = vmatpush2.msra.mxu0 0.0
    %210 = vmatprep.subr.mxu0 0.0
    %211 = vmatpush2.msra.mxu0 0.0
    %212 = vmatprep.subr.mxu0 0.0
    %213 = vmatpush2.msra.mxu0 0.0
    %214 = vmatprep.subr.mxu0 0.0
    %215 = vmatpush2.msra.mxu0 0.0
    %216 = vmatprep.subr.mxu0 0.0
    %217 = vmatpush2.msra.mxu0 0.0
    %218 = vmatprep.subr.mxu0 0.0
    %219 = vmatpush2.msra.mxu0 0.0
    %220 = vmatprep.subr.mxu0 0.0
    %221 = vmatpush2.msra.mxu0 0.0
    %222 = vmatprep.subr.mxu0 0.0
    %223 = vmatpush2.msra.mxu0 0.0
    %224 = vmatprep.mubr.f32.mxu0 0.0
    %225 = vmatmul.mubr.f32.gmra.mxu0 %v65
    %v226 = vpop.f32.mrf.mxu0
    %v227 = vadd.f32 0.0, %v226
    %v228 = vpop.f32.mrf.mxu0
    %v229 = vadd.f32 0.0, %v228
    %230 = vmatprep.mubr.f32.mxu0 0.0
    %231 = vmatmul.mubr.f32.gmra.mxu0 %v68
    %v232 = vpop.f32.mrf.mxu0
    %v233 = vadd.f32 0.0, %v232
    %v234 = vpop.f32.mrf.mxu0
    %v235 = vadd.f32 0.0, %v234
    %236 = vmatprep.mubr.f32.mxu0 0.0
    %237 = vmatmul.mubr.f32.gmra.mxu0 %v71
    %v238 = vpop.f32.mrf.mxu0
    %v239 = vadd.f32 0.0, %v238
    %v240 = vpop.f32.mrf.mxu0
    %v241 = vadd.f32 0.0, %v240
    %242 = vmatprep.mubr.f32.mxu0 0.0
    %243 = vmatmul.mubr.f32.gmra.mxu0 %v74
    %v244 = vpop.f32.mrf.mxu0
    %v245 = vadd.f32 0.0, %v244
    %v246 = vpop.f32.mrf.mxu0
    %v247 = vadd.f32 0.0, %v246
    %248 = vmatprep.mubr.f32.mxu0 0.0
    %249 = vmatmul.mubr.f32.gmra.mxu0 %v77
    %v250 = vpop.f32.mrf.mxu0
    %v251 = vadd.f32 0.0, %v250
    %v252 = vpop.f32.mrf.mxu0
    %v253 = vadd.f32 0.0, %v252
    %254 = vmatprep.mubr.f32.mxu0 0.0
    %255 = vmatmul.mubr.f32.gmra.mxu0 %v80
    %v256 = vpop.f32.mrf.mxu0
    %v257 = vadd.f32 0.0, %v256
    %v258 = vpop.f32.mrf.mxu0
    %v259 = vadd.f32 0.0, %v258
    %260 = vmatprep.mubr.f32.mxu0 0.0
    %261 = vmatmul.mubr.f32.gmra.mxu0 %v83
    %v262 = vpop.f32.mrf.mxu0
    %v263 = vadd.f32 0.0, %v262
    %v264 = vpop.f32.mrf.mxu0
    %v265 = vadd.f32 0.0, %v264
    %266 = vmatprep.mubr.f32.mxu0 0.0
    %267 = vmatmul.mubr.f32.gmra.mxu0 %v86
    %v268 = vpop.f32.mrf.mxu0
    %v269 = vadd.f32 0.0, %v268
    %v270 = vpop.f32.mrf.mxu0
    %v271 = vadd.f32 0.0, %v270
    %272 = vmatprep.mubr.f32.mxu0 0.0
    %273 = vmatmul.mubr.f32.gmra.mxu0 %v89
    %v274 = vpop.f32.mrf.mxu0
    %v275 = vadd.f32 0.0, %v274
    %v276 = vpop.f32.mrf.mxu0
    %v277 = vadd.f32 0.0, %v276
    %278 = vmatprep.mubr.f32.mxu0 0.0
    %279 = vmatmul.mubr.f32.gmra.mxu0 %v92
    %v280 = vpop.f32.mrf.mxu0
    %v281 = vadd.f32 0.0, %v280
    %v282 = vpop.f32.mrf.mxu0
    %v283 = vadd.f32 0.0, %v282
    %284 = vmatprep.mubr.f32.mxu0 0.0
    %285 = vmatmul.mubr.f32.gmra.mxu0 %v95
    %v286 = vpop.f32.mrf.mxu0
    %v287 = vadd.f32 0.0, %v286
    %v288 = vpop.f32.mrf.mxu0
    %v289 = vadd.f32 0.0, %v288
    %290 = vmatprep.mubr.f32.mxu0 0.0
    %291 = vmatmul.mubr.f32.gmra.mxu0 %v98
    %v292 = vpop.f32.mrf.mxu0
    %v293 = vadd.f32 0.0, %v292
    %v294 = vpop.f32.mrf.mxu0
    %v295 = vadd.f32 0.0, %v294
    %296 = vmatprep.mubr.f32.mxu0 0.0
    %297 = vmatmul.mubr.f32.gmra.mxu0 %v101
    %v298 = vpop.f32.mrf.mxu0
    %v299 = vadd.f32 0.0, %v298
    %v300 = vpop.f32.mrf.mxu0
    %v301 = vadd.f32 0.0, %v300
    %302 = vmatprep.mubr.f32.mxu0 0.0
    %303 = vmatmul.mubr.f32.gmra.mxu0 %v104
    %v304 = vpop.f32.mrf.mxu0
    %v305 = vadd.f32 0.0, %v304
    %v306 = vpop.f32.mrf.mxu0
    %v307 = vadd.f32 0.0, %v306
    %308 = vmatprep.mubr.f32.mxu0 0.0
    %309 = vmatmul.mubr.f32.gmra.mxu0 %v107
    %v310 = vpop.f32.mrf.mxu0
    %v311 = vadd.f32 0.0, %v310
    %v312 = vpop.f32.mrf.mxu0
    %v313 = vadd.f32 0.0, %v312
    %314 = vmatprep.mubr.f32.mxu0 0.0
    %315 = vmatmul.mubr.f32.gmra.mxu0 %v110
    %v316 = vpop.f32.mrf.mxu0
    %v317 = vadd.f32 0.0, %v316
    %v318 = vpop.f32.mrf.mxu0
    %v319 = vadd.f32 0.0, %v318
    %320 = vmatprep.mubr.f32.mxu0 0.0
    %321 = vmatmul.mubr.f32.gmra.mxu0 %v113
    %v322 = vpop.f32.mrf.mxu0
    %v323 = vadd.f32 0.0, %v322
    %v324 = vpop.f32.mrf.mxu0
    %v325 = vadd.f32 0.0, %v324
    %326 = vmatprep.mubr.f32.mxu0 0.0
    %327 = vmatmul.mubr.f32.gmra.mxu0 %v116
    %v328 = vpop.f32.mrf.mxu0
    %v329 = vadd.f32 0.0, %v328
    %v330 = vpop.f32.mrf.mxu0
    %v331 = vadd.f32 0.0, %v330
    %332 = vmatprep.mubr.f32.mxu0 0.0
    %333 = vmatmul.mubr.f32.gmra.mxu0 %v119
    %v334 = vpop.f32.mrf.mxu0
    %v335 = vadd.f32 0.0, %v334
    %v336 = vpop.f32.mrf.mxu0
    %v337 = vadd.f32 0.0, %v336
    %338 = vmatprep.mubr.f32.mxu0 0.0
    %339 = vmatmul.mubr.f32.gmra.mxu0 %v122
    %v340 = vpop.f32.mrf.mxu0
    %v341 = vadd.f32 0.0, %v340
    %v342 = vpop.f32.mrf.mxu0
    %v343 = vadd.f32 0.0, %v342
    %344 = vmatprep.mubr.f32.mxu0 0.0
    %345 = vmatmul.mubr.f32.gmra.mxu0 %v125
    %v346 = vpop.f32.mrf.mxu0
    %v347 = vadd.f32 0.0, %v346
    %v348 = vpop.f32.mrf.mxu0
    %v349 = vadd.f32 0.0, %v348
    %350 = vmatprep.mubr.f32.mxu0 0.0
    %351 = vmatmul.mubr.f32.gmra.mxu0 %v128
    %v352 = vpop.f32.mrf.mxu0
    %v353 = vadd.f32 0.0, %v352
    %v354 = vpop.f32.mrf.mxu0
    %v355 = vadd.f32 0.0, %v354
    %356 = vmatprep.mubr.f32.mxu0 0.0
    %357 = vmatmul.mubr.f32.gmra.mxu0 %v131
    %v358 = vpop.f32.mrf.mxu0
    %v359 = vadd.f32 0.0, %v358
    %v360 = vpop.f32.mrf.mxu0
    %v361 = vadd.f32 0.0, %v360
    %362 = vmatprep.mubr.f32.mxu0 0.0
    %363 = vmatmul.mubr.f32.gmra.mxu0 %v134
    %v364 = vpop.f32.mrf.mxu0
    %v365 = vadd.f32 0.0, %v364
    %v366 = vpop.f32.mrf.mxu0
    %v367 = vadd.f32 0.0, %v366
    %368 = vmatprep.mubr.f32.mxu0 0.0
    %369 = vmatmul.mubr.f32.gmra.mxu0 %v137
    %v370 = vpop.f32.mrf.mxu0
    %v371 = vadd.f32 0.0, %v370
    %v372 = vpop.f32.mrf.mxu0
    %v373 = vadd.f32 0.0, %v372
    %374 = vmatprep.mubr.f32.mxu0 0.0
    %375 = vmatmul.mubr.f32.gmra.mxu0 %v140
    %v376 = vpop.f32.mrf.mxu0
    %v377 = vadd.f32 0.0, %v376
    %v378 = vpop.f32.mrf.mxu0
    %v379 = vadd.f32 0.0, %v378
    %380 = vmatprep.mubr.f32.mxu0 0.0
    %381 = vmatmul.mubr.f32.gmra.mxu0 %v143
    %v382 = vpop.f32.mrf.mxu0
    %v383 = vadd.f32 0.0, %v382
    %v384 = vpop.f32.mrf.mxu0
    %v385 = vadd.f32 0.0, %v384
    %386 = vmatprep.mubr.f32.mxu0 0.0
    %387 = vmatmul.mubr.f32.gmra.mxu0 %v146
    %v388 = vpop.f32.mrf.mxu0
    %v389 = vadd.f32 0.0, %v388
    %v390 = vpop.f32.mrf.mxu0
    %v391 = vadd.f32 0.0, %v390
    %392 = vmatprep.mubr.f32.mxu0 0.0
    %393 = vmatmul.mubr.f32.gmra.mxu0 %v149
    %v394 = vpop.f32.mrf.mxu0
    %v395 = vadd.f32 0.0, %v394
    %v396 = vpop.f32.mrf.mxu0
    %v397 = vadd.f32 0.0, %v396
    %398 = vmatprep.mubr.f32.mxu0 0.0
    %399 = vmatmul.mubr.f32.gmra.mxu0 %v152
    %v400 = vpop.f32.mrf.mxu0
    %v401 = vadd.f32 0.0, %v400
    %v402 = vpop.f32.mrf.mxu0
    %v403 = vadd.f32 0.0, %v402
    %404 = vmatprep.mubr.f32.mxu0 0.0
    %405 = vmatmul.mubr.f32.gmra.mxu0 %v155
    %v406 = vpop.f32.mrf.mxu0
    %v407 = vadd.f32 0.0, %v406
    %v408 = vpop.f32.mrf.mxu0
    %v409 = vadd.f32 0.0, %v408
    %410 = vmatprep.mubr.f32.mxu0 0.0
    %411 = vmatmul.mubr.f32.gmra.mxu0 %v158
    %v412 = vpop.f32.mrf.mxu0
    %v413 = vadd.f32 0.0, %v412
    %v414 = vpop.f32.mrf.mxu0
    %v415 = vadd.f32 0.0, %v414
    %416 = vdwg.mxu0
    %v417 = vpack.c.bf16 %v233, %v227
    %v418 = vpack.c.bf16 %v245, %v239
    %v419 = vpack.c.bf16 %v257, %v251
    %v420 = vpack.c.bf16 %v269, %v263
    %v421 = vpack.c.bf16 %v281, %v275
    %v422 = vpack.c.bf16 %v293, %v287
    %v423 = vpack.c.bf16 %v305, %v299
    %v424 = vpack.c.bf16 %v317, %v311
    %v425 = vpack.c.bf16 %v329, %v323
    %v426 = vpack.c.bf16 %v341, %v335
    %v427 = vpack.c.bf16 %v353, %v347
    %v428 = vpack.c.bf16 %v365, %v359
    %v429 = vpack.c.bf16 %v377, %v371
    %v430 = vpack.c.bf16 %v389, %v383
    %v431 = vpack.c.bf16 %v401, %v395
    %v432 = vpack.c.bf16 %v413, %v407
    %v449 = vunpack.c.l.b16 %v417
    %v450 = vunpack.c.h.b16 %v417
    %v451 = vunpack.c.l.b16 %v418
    %v452 = vunpack.c.h.b16 %v418
    %v453 = vunpack.c.l.b16 %v419
    %v454 = vunpack.c.h.b16 %v419
    %v455 = vunpack.c.l.b16 %v420
    %v456 = vunpack.c.h.b16 %v420
    %v457 = vunpack.c.l.b16 %v421
    %v458 = vunpack.c.h.b16 %v421
    %v459 = vunpack.c.l.b16 %v422
    %v460 = vunpack.c.h.b16 %v422
    %v461 = vunpack.c.l.b16 %v423
    %v462 = vunpack.c.h.b16 %v423
    %v463 = vunpack.c.l.b16 %v424
    %v464 = vunpack.c.h.b16 %v424
    %v465 = vunpack.c.l.b16 %v425
    %v466 = vunpack.c.h.b16 %v425
    %v467 = vunpack.c.l.b16 %v426
    %v468 = vunpack.c.h.b16 %v426
    %v469 = vunpack.c.l.b16 %v427
    %v470 = vunpack.c.h.b16 %v427
    %v471 = vunpack.c.l.b16 %v428
    %v472 = vunpack.c.h.b16 %v428
    %v473 = vunpack.c.l.b16 %v429
    %v474 = vunpack.c.h.b16 %v429
    %v475 = vunpack.c.l.b16 %v430
    %v476 = vunpack.c.h.b16 %v430
    %v477 = vunpack.c.l.b16 %v431
    %v478 = vunpack.c.h.b16 %v431
    %v479 = vunpack.c.l.b16 %v432
    %v480 = vunpack.c.h.b16 %v432
    %v481 = vpack.c.b16 %v449, %v449
    %v482 = vpack.c.b16 %v450, %v450
    %v483 = vpack.c.b16 %v451, %v451
    %v484 = vpack.c.b16 %v452, %v452
    %v485 = vpack.c.b16 %v453, %v453
    %v486 = vpack.c.b16 %v454, %v454
    %v487 = vpack.c.b16 %v455, %v455
    %v488 = vpack.c.b16 %v456, %v456
    %v489 = vpack.c.b16 %v457, %v457
    %v490 = vpack.c.b16 %v458, %v458
    %v491 = vpack.c.b16 %v459, %v459
    %v492 = vpack.c.b16 %v460, %v460
    %v493 = vpack.c.b16 %v461, %v461
    %v494 = vpack.c.b16 %v462, %v462
    %v495 = vpack.c.b16 %v463, %v463
    %v496 = vpack.c.b16 %v464, %v464
    %v497 = vpack.c.b16 %v465, %v465
    %v498 = vpack.c.b16 %v466, %v466
    %v499 = vpack.c.b16 %v467, %v467
    %v500 = vpack.c.b16 %v468, %v468
    %v501 = vpack.c.b16 %v469, %v469
    %v502 = vpack.c.b16 %v470, %v470
    %v503 = vpack.c.b16 %v471, %v471
    %v504 = vpack.c.b16 %v472, %v472
    %v505 = vpack.c.b16 %v473, %v473
    %v506 = vpack.c.b16 %v474, %v474
    %v507 = vpack.c.b16 %v475, %v475
    %v508 = vpack.c.b16 %v476, %v476
    %v509 = vpack.c.b16 %v477, %v477
    %v510 = vpack.c.b16 %v478, %v478
    %v511 = vpack.c.b16 %v479, %v479
    %v512 = vpack.c.b16 %v480, %v480
    %545 = vst [vmem:[#allocation2] sm:$0xf] %v481
    %546 = vst [vmem:[#allocation2 + $0x4] sm:$0xf] %v482
    %547 = vst [vmem:[#allocation2 + $0x8] sm:$0xf] %v483
    %548 = vst [vmem:[#allocation2 + $0xc] sm:$0xf] %v484
    %549 = vst [vmem:[#allocation2 + $0x10] sm:$0xf] %v485
    %550 = vst [vmem:[#allocation2 + $0x14] sm:$0xf] %v486
    %551 = vst [vmem:[#allocation2 + $0x18] sm:$0xf] %v487
    %552 = vst [vmem:[#allocation2 + $0x1c] sm:$0xf] %v488
    %553 = vst [vmem:[#allocation2 + $0x20] sm:$0xf] %v489
    %554 = vst [vmem:[#allocation2 + $0x24] sm:$0xf] %v490
    %555 = vst [vmem:[#allocation2 + $0x28] sm:$0xf] %v491
    %556 = vst [vmem:[#allocation2 + $0x2c] sm:$0xf] %v492
    %557 = vst [vmem:[#allocation2 + $0x30] sm:$0xf] %v493
    %558 = vst [vmem:[#allocation2 + $0x34] sm:$0xf] %v494
    %559 = vst [vmem:[#allocation2 + $0x38] sm:$0xf] %v495
    %560 = vst [vmem:[#allocation2 + $0x3c] sm:$0xf] %v496
    %561 = vst [vmem:[#allocation2 + $0x40] sm:$0xf] %v497
    %562 = vst [vmem:[#allocation2 + $0x44] sm:$0xf] %v498
    %563 = vst [vmem:[#allocation2 + $0x48] sm:$0xf] %v499
    %564 = vst [vmem:[#allocation2 + $0x4c] sm:$0xf] %v500
    %565 = vst [vmem:[#allocation2 + $0x50] sm:$0xf] %v501
    %566 = vst [vmem:[#allocation2 + $0x54] sm:$0xf] %v502
    %567 = vst [vmem:[#allocation2 + $0x58] sm:$0xf] %v503
    %568 = vst [vmem:[#allocation2 + $0x5c] sm:$0xf] %v504
    %569 = vst [vmem:[#allocation2 + $0x60] sm:$0xf] %v505
    %570 = vst [vmem:[#allocation2 + $0x64] sm:$0xf] %v506
    %571 = vst [vmem:[#allocation2 + $0x68] sm:$0xf] %v507
    %572 = vst [vmem:[#allocation2 + $0x6c] sm:$0xf] %v508
    %573 = vst [vmem:[#allocation2 + $0x70] sm:$0xf] %v509
    %574 = vst [vmem:[#allocation2 + $0x74] sm:$0xf] %v510
    %575 = vst [vmem:[#allocation2 + $0x78] sm:$0xf] %v511
    %576 = vst [vmem:[#allocation2 + $0x7c] sm:$0xf] %v512
    %577 = vst [vmem:[#allocation4] sm:$0xff] %v229
    %578 = vst [vmem:[#allocation4 + $0x8] sm:$0xff] %v235
    %579 = vst [vmem:[#allocation4 + $0x10] sm:$0xff] %v241
    %580 = vst [vmem:[#allocation4 + $0x18] sm:$0xff] %v247
    %581 = vst [vmem:[#allocation4 + $0x20] sm:$0xff] %v253
    %582 = vst [vmem:[#allocation4 + $0x28] sm:$0xff] %v259
    %583 = vst [vmem:[#allocation4 + $0x30] sm:$0xff] %v265
    %584 = vst [vmem:[#allocation4 + $0x38] sm:$0xff] %v271
    %585 = vst [vmem:[#allocation4 + $0x40] sm:$0xff] %v277
    %586 = vst [vmem:[#allocation4 + $0x48] sm:$0xff] %v283
    %587 = vst [vmem:[#allocation4 + $0x50] sm:$0xff] %v289
    %588 = vst [vmem:[#allocation4 + $0x58] sm:$0xff] %v295
    %589 = vst [vmem:[#allocation4 + $0x60] sm:$0xff] %v301
    %590 = vst [vmem:[#allocation4 + $0x68] sm:$0xff] %v307
    %591 = vst [vmem:[#allocation4 + $0x70] sm:$0xff] %v313
    %592 = vst [vmem:[#allocation4 + $0x78] sm:$0xff] %v319
    %593 = vst [vmem:[#allocation4 + $0x80] sm:$0xff] %v325
    %594 = vst [vmem:[#allocation4 + $0x88] sm:$0xff] %v331
    %595 = vst [vmem:[#allocation4 + $0x90] sm:$0xff] %v337
    %596 = vst [vmem:[#allocation4 + $0x98] sm:$0xff] %v343
    %597 = vst [vmem:[#allocation4 + $0xa0] sm:$0xff] %v349
    %598 = vst [vmem:[#allocation4 + $0xa8] sm:$0xff] %v355
    %599 = vst [vmem:[#allocation4 + $0xb0] sm:$0xff] %v361
    %600 = vst [vmem:[#allocation4 + $0xb8] sm:$0xff] %v367
    %601 = vst [vmem:[#allocation4 + $0xc0] sm:$0xff] %v373
    %602 = vst [vmem:[#allocation4 + $0xc8] sm:$0xff] %v379
    %603 = vst [vmem:[#allocation4 + $0xd0] sm:$0xff] %v385
    %604 = vst [vmem:[#allocation4 + $0xd8] sm:$0xff] %v391
    %605 = vst [vmem:[#allocation4 + $0xe0] sm:$0xff] %v397
    %606 = vst [vmem:[#allocation4 + $0xe8] sm:$0xff] %v403
    %607 = vst [vmem:[#allocation4 + $0xf0] sm:$0xff] %v409
    %608 = vst [vmem:[#allocation4 + $0xf8] sm:$0xff] %v415
    // Predicated region
    $region10: #{tpu_custom_call.1} parent=1 // pred_check
      _
    $region11: #{tpu_custom_call.1} parent=1 // pred_check_branch
      %610 = sbr.rel (0) target = $region13
    $region12: #{tpu_custom_call.1} parent=1 // pred_region
      %s612 = ssub.s32 2048, 2048
      %613 = vsyncadd [#allocation3], %s612
      %s614 = sshll.u32 [#allocation2], 4
      %s615 = int_to_ptr.vmem [resolvable:$true] %s614
      %620 = dma.vmem_to_hbm [thread:$0]  %s615, 2048, %s2, [#allocation3], 64, 64, 4
    $region13: #{tpu_custom_call.1} parent=1 // pred_fallthru
      _
    // Predicated region
    $region14: #{tpu_custom_call.1} parent=1 // pred_check
      _
    $region15: #{tpu_custom_call.1} parent=1 // pred_check_branch
      %622 = sbr.rel (0) target = $region17
    $region16: #{tpu_custom_call.1} parent=1 // pred_region
      %s624 = ssub.s32 4096, 4096
      %625 = vsyncadd [#allocation5], %s624
      %s626 = sshll.u32 [#allocation4], 4
      %s627 = int_to_ptr.vmem [resolvable:$true] %s626
      %632 = dma.vmem_to_hbm [thread:$0]  %s627, 4096, %s3, [#allocation5], 128, 128, 8
    $region17: #{tpu_custom_call.1} parent=1 // pred_fallthru
      _
    // Predicated region
    $region18: #{tpu_custom_call.1} parent=1 // pred_check
      _
    $region19: #{tpu_custom_call.1} parent=1 // pred_check_branch
      %634 = sbr.rel (0) target = $region21
    $region20: #{tpu_custom_call.1} parent=1 // pred_region
      %635 = dma.done [#allocation3], 2048
    $region21: #{tpu_custom_call.1} parent=1 // pred_fallthru
      _
    // Predicated region
    $region22: #{tpu_custom_call.1} parent=1 // pred_check
      _
    $region23: #{tpu_custom_call.1} parent=1 // pred_check_branch
      %637 = sbr.rel (0) target = $region25
    $region24: #{tpu_custom_call.1} parent=1 // pred_region
      %638 = dma.done [#allocation5], 4096
    $region25: #{tpu_custom_call.1} parent=1 // pred_fallthru
      _
    %639 = vsyncpa [#allocation3], 1
    %640 = vsyncpa [#allocation5], 1

</llo_original>
